<compile_context>
chip_gen: v6e
topology: v6e:2x2x1
jax: 0.10.0
libtpu: 0.0.40
codegen_flags: <defaults>
</compile_context>

<pallas_src>
import jax
import jax.numpy as jnp
from jax.experimental import pallas as pl
from jax.experimental.pallas import tpu as pltpu


def _round_up(x: int, m: int) -> int:
    return ((x + m - 1) // m) * m


def fused_linear_kernel(x_ref, w_ref, b_ref, o_ref):
    x = x_ref[...]
    w = w_ref[...]
    # bf16-weight path: cast x to the narrow dtype so the MXU runs its native
    # bf16 x bf16 pipeline with f32 accumulation (trace-time branch).
    if w.dtype != x.dtype:
        x = x.astype(w.dtype)
    y = jnp.dot(x, w, preferred_element_type=jnp.float32)
    o_ref[...] = (y + b_ref[...].astype(jnp.float32)).astype(o_ref.dtype)


def prepare_params(w1, b1, w2, b2, *, weight_dtype=jnp.float32, lane=128):
    """One-time parameter prep (do NOT call per forward pass).

    w1: (H, D_in), b1: (H,), w2: (D_out, H), b2: (D_out,)  [PyTorch Linear layout]
    Returns (w_pad, b_pad, d_out) with
      w_pad: (D_in, D_out_pad) = W1^T @ W2^T, zero-padded on the lane dim,
             cast to `weight_dtype` (bf16 recommended for production),
      b_pad: (1, D_out_pad) f32 = b1 @ W2^T + b2, zero-padded.
    NOTE: lane padding gives unmasked stores but amplifies output write bytes
    for tiny D_out (16 -> 128 is 8x); downstream consumers can keep the padded
    layout (pass d_out=None to two_layer_net) to avoid the slice copy.
    """
    w = jnp.transpose(w1) @ jnp.transpose(w2)          # (D_in, D_out), folded in f32
    b = b1 @ jnp.transpose(w2) + b2                    # (D_out,)
    d_in, d_out = w.shape
    d_out_pad = _round_up(d_out, lane)
    if d_out_pad != d_out:
        w = jnp.pad(w, ((0, 0), (0, d_out_pad - d_out)))
        b = jnp.pad(b, (0, d_out_pad - d_out))
    return w.astype(weight_dtype), b.reshape(1, d_out_pad).astype(jnp.float32), d_out


# Scoped-VMEM limit passed to Mosaic (defaults are only 16/32/32 MiB on
# v5e/v6e/v7x); tiles are sized against a smaller budget to leave pipeline
# headroom (and to stay comfortable under v7x's 64 MiB physical VMEM).
_VMEM_LIMIT_BYTES = 64 * 1024 * 1024
_TILE_VMEM_BUDGET = 24 * 1024 * 1024


def _choose_tiles(n, d_in, d_out_pad, x_bytes, w_bytes, o_bytes):
    """Pick (TM, TN). Big TM is the main HBM-roofline lever for large N."""
    tn = d_out_pad if d_out_pad <= 512 else 512        # 128-multiple column tile
    if n <= 128:
        return _round_up(max(n, 1), 8), tn             # tiny-N path (toy shapes)

    def vmem_bytes(tm_):
        return (2 * tm_ * d_in * x_bytes               # x tile, double-buffered
                + 2 * tm_ * tn * o_bytes               # out tile, double-buffered
                + 2 * d_in * tn * w_bytes              # W tile (resident if grid_n==1)
                + 2 * tn * 4)                          # bias

    tm = 1024
    # Keep >= 2 batch-grid steps (v7x has 2 TCs) and stay inside the budget.
    while tm > 128 and (pl.cdiv(n, tm) < 2 or vmem_bytes(tm) > _TILE_VMEM_BUDGET):
        tm //= 2
    return tm, tn


def two_layer_net(x, w_pad, b_pad, d_out=None):
    """Folded TwoLayerNet forward.

    x: (N, D_in) f32; w_pad: (D_in, D_out_pad) f32/bf16; b_pad: (1, D_out_pad) f32.
    Returns (N, d_out) if d_out is given, else the padded (N, D_out_pad) slab.
    """
    n, d_in = x.shape
    d_out_pad = w_pad.shape[1]
    tm, tn = _choose_tiles(n, d_in, d_out_pad,
                           x.dtype.itemsize, w_pad.dtype.itemsize, x.dtype.itemsize)
    grid = (pl.cdiv(n, tm), pl.cdiv(d_out_pad, tn))

    out = pl.pallas_call(
        fused_linear_kernel,
        out_shape=jax.ShapeDtypeStruct((n, d_out_pad), x.dtype),
        grid_spec=pltpu.PrefetchScalarGridSpec(
            num_scalar_prefetch=0,
            grid=grid,
            in_specs=[
                # x tile: constant across the inner column axis -> fetched once
                # per batch tile; ragged edge block is fine (OOB rows discarded).
                pl.BlockSpec((tm, d_in), lambda i, j: (i, 0)),
                # W / b column tiles; resident across the whole grid when the
                # column axis collapses to one step (common small-D_out case).
                pl.BlockSpec((d_in, tn), lambda i, j: (0, j)),
                pl.BlockSpec((1, tn), lambda i, j: (0, j)),
            ],
            out_specs=pl.BlockSpec((tm, tn), lambda i, j: (i, j)),
        ),
        compiler_params=pltpu.CompilerParams(
            dimension_semantics=("parallel", "parallel"),
            vmem_limit_bytes=_VMEM_LIMIT_BYTES,
        ),
        cost_estimate=pl.CostEstimate(
            flops=2 * n * d_in * d_out_pad,
            transcendentals=0,
            bytes_accessed=(n * d_in * x.dtype.itemsize
                            + d_in * d_out_pad * w_pad.dtype.itemsize
                            + d_out_pad * 4
                            + n * d_out_pad * x.dtype.itemsize),
        ),
    )(x, w_pad, b_pad)

    if d_out is None or d_out == d_out_pad:
        return out                     # keep lane-dense padded layout, no copy
    return out[:, :d_out]              # column slice only (no row padding used)


if __name__ == "__main__":
    # Small shapes consistent with TwoLayerNet(D_in, H, D_out)
    N, D_in, H, D_out = 8, 32, 64, 16

    key = jax.random.PRNGKey(0)
    kx, k1, kb1, k2, kb2 = jax.random.split(key, 5)

    x = jax.random.normal(kx, (N, D_in), dtype=jnp.float32)
    # PyTorch Linear stores weight as (out_features, in_features)
    w1 = jax.random.normal(k1, (H, D_in), dtype=jnp.float32) * 0.1
    b1 = jax.random.normal(kb1, (H,), dtype=jnp.float32) * 0.1
    w2 = jax.random.normal(k2, (D_out, H), dtype=jnp.float32) * 0.1
    b2 = jax.random.normal(kb2, (D_out,), dtype=jnp.float32) * 0.1

    # Pure-JAX reference of the original (un-folded) forward.
    y_ref = (x @ w1.T + b1) @ w2.T + b2

    # f32 folded weights: matches the module's numerics (modulo fold rounding).
    w_f32, b_f32, d_out = prepare_params(w1, b1, w2, b2)
    y = jax.block_until_ready(two_layer_net(x, w_f32, b_f32, d_out))
    assert y.shape == (N, D_out)
    assert jnp.allclose(y, y_ref, atol=1e-4, rtol=1e-4)

    # bf16 folded weights (production path: half W HBM/VMEM, native MXU dtype,
    # f32 accumulation); looser tolerance reflects bf16 weight rounding.
    w_bf16, b_bf16, _ = prepare_params(w1, b1, w2, b2, weight_dtype=jnp.bfloat16)
    y_bf = jax.block_until_ready(two_layer_net(x, w_bf16, b_bf16, d_out))
    assert y_bf.shape == (N, D_out)
    assert jnp.allclose(y_bf, y_ref, atol=3e-2, rtol=3e-2)

    print("KERNEL_OK")
</pallas_src>

<mosaic_0001>
module attributes {stable_mosaic.version = 11 : i64} {
  func.func @fused_linear_kernel(%arg0: i32, %arg1: i32, %arg2: memref<8x32xf32, #tpu.memory_space<vmem>>, %arg3: memref<32x128xf32, #tpu.memory_space<vmem>>, %arg4: memref<1x128xf32, #tpu.memory_space<vmem>>, %arg5: memref<8x128xf32, #tpu.memory_space<vmem>>) attributes {dimension_semantics = [#tpu.dimension_semantics<parallel>, #tpu.dimension_semantics<parallel>], iteration_bounds = array<i64: 1, 1>, scalar_prefetch = 0 : i64, scratch_operands = 0 : i64, tpu.core_type = #tpu.core_type<tc>, window_params = [{transform_indices = @transform_0, window_bounds = array<i64: 8, 32>}, {transform_indices = @transform_1, window_bounds = array<i64: 32, 128>}, {transform_indices = @transform_2, window_bounds = array<i64: 1, 128>}, {transform_indices = @transform_3, window_bounds = array<i64: 8, 128>}]} {
    %c0 = arith.constant 0 : index
    %c0_0 = arith.constant 0 : index
    %0 = vector.load %arg2[%c0, %c0_0] : memref<8x32xf32, #tpu.memory_space<vmem>>, vector<8x32xf32>
    %c0_1 = arith.constant 0 : index
    %c0_2 = arith.constant 0 : index
    %1 = vector.load %arg3[%c0_1, %c0_2] : memref<32x128xf32, #tpu.memory_space<vmem>>, vector<32x128xf32>
    %cst = arith.constant dense<0.000000e+00> : vector<8x128xf32>
    %2 = tpu.matmul %0, %1, %cst {dimension_numbers = #tpu.dot_dimension_numbers<[1], [0], [0], [1], [0, 0, 1, 1], [], []>} : vector<8x32xf32>, vector<32x128xf32>, vector<8x128xf32> -> vector<8x128xf32>
    %c0_3 = arith.constant 0 : index
    %c0_4 = arith.constant 0 : index
    %3 = vector.load %arg4[%c0_3, %c0_4] : memref<1x128xf32, #tpu.memory_space<vmem>>, vector<1x128xf32>
    %4 = vector.broadcast %3 : vector<1x128xf32> to vector<8x128xf32>
    %5 = arith.addf %2, %4 : vector<8x128xf32>
    %c0_5 = arith.constant 0 : index
    %c0_6 = arith.constant 0 : index
    %6 = vector.load %arg5[%c0_5, %c0_6] : memref<8x128xf32, #tpu.memory_space<vmem>>, vector<8x128xf32>
    tpu.vector_store %arg5[%c0_5, %c0_6], %5 {strides = array<i32>} : memref<8x128xf32, #tpu.memory_space<vmem>>, vector<8x128xf32>,
    return
  }
  func.func @transform_0(%arg0: i32, %arg1: i32) -> (i32, i32) {
    %c0_i32 = arith.constant 0 : i32
    %c0_i32_0 = arith.constant 0 : i32
    return %arg0, %c0_i32 : i32, i32
  }
  func.func @transform_1(%arg0: i32, %arg1: i32) -> (i32, i32) {
    %c0_i32 = arith.constant 0 : i32
    %c0_i32_0 = arith.constant 0 : i32
    return %c0_i32, %arg1 : i32, i32
  }
  func.func @transform_2(%arg0: i32, %arg1: i32) -> (i32, i32) {
    %c0_i32 = arith.constant 0 : i32
    %c0_i32_0 = arith.constant 0 : i32
    return %c0_i32, %arg1 : i32, i32
  }
  func.func @transform_3(%arg0: i32, %arg1: i32) -> (i32, i32) {
    %c0_i32 = arith.constant 0 : i32
    return %arg0, %arg1 : i32, i32
  }
}

</mosaic_0001>

<llo_original>
// kernel: tpu_custom_call.1
$region0: #{tpu_custom_call.1}
  #allocation0 [shape = 'u32[]', space=smem, size = 0x4, offset = 0x4, fixed_abs, tag = 'smem constant byte address 0x4 - core index']
  #allocation1 [shape = 'u32[144,128]{1,0:T(1,128)}', space=vmem, size = 0x12000, scoped, tag = 'internal scratch']
  %s0 = inlined_call_operand.hbm [shape: f32[8,32], index: 0, kind: input, shape index: {}]
  %s1 = inlined_call_operand.hbm [shape: f32[32,128], index: 1, kind: input, shape index: {}]
  %s2 = inlined_call_operand.vmem [shape: f32[1,128], index: 2, kind: input, shape index: {}]
  %s3 = inlined_call_operand.hbm [shape: f32[8,128], index: 3, kind: output, shape index: {}]
  %s4 = sld [smem:[#allocation0]]
  $region30: #{tpu_custom_call.1} parent=0
    _
  %s6 = ssub.s32 1, %s4
  %s7 = scalar_select 0, %s6, %s4
  $region1: #{tpu_custom_call.1} parent=0
    #allocation2 [shape = 'u8[4096]{0}', space=vmem, size = 0x1000, scoped, tag = 'input window, operand 0, single buffered']
    #allocation3 [shape = 's32[1]{0}', space=sflag, size = 0x4, scoped, tag = 'scoped memory for tpu_custom_call.1']
    #allocation4 [shape = 's32[1]{0}', space=sflag, size = 0x4, scoped, tag = 'scoped memory for tpu_custom_call.1']
    #allocation5 [shape = 'u8[16384]{0}', space=vmem, size = 0x4000, scoped, tag = 'input window, operand 1, single buffered']
    #allocation6 [shape = 's32[1]{0}', space=sflag, size = 0x4, scoped, tag = 'scoped memory for tpu_custom_call.1']
    #allocation7 [shape = 'u8[4096]{0}', space=vmem, size = 0x1000, scoped, tag = 'output window, operand 0, single buffered']
    %8 = vsyncpa [#allocation3], 0
    %9 = vsyncpa [#allocation6], 0
    %10 = vsyncpa [#allocation4], 0
    // Predicated region
    $region2: #{tpu_custom_call.1} parent=1 // pred_check
      _
    $region3: #{tpu_custom_call.1} parent=1 // pred_check_branch
      %12 = sbr.rel (0) target = $region5
    $region4: #{tpu_custom_call.1} parent=1 // pred_region
      %s14 = ssub.s32 128, 128
      %15 = vsyncadd [#allocation3], %s14
      %s17 = sshll.u32 [#allocation2], 4
      %s18 = int_to_ptr.vmem [resolvable:$true] %s17
      %20 = dma.hbm_to_vmem [thread:$0]  %s0, 128, %s18, [#allocation3]
    $region5: #{tpu_custom_call.1} parent=1 // pred_fallthru
      _
    // Predicated region
    $region6: #{tpu_custom_call.1} parent=1 // pred_check
      _
    $region7: #{tpu_custom_call.1} parent=1 // pred_check_branch
      %22 = sbr.rel (0) target = $region9
    $region8: #{tpu_custom_call.1} parent=1 // pred_region
      %s24 = ssub.s32 512, 512
      %25 = vsyncadd [#allocation6], %s24
      %s26 = sshll.u32 [#allocation5], 4
      %s27 = int_to_ptr.vmem [resolvable:$true] %s26
      %32 = dma.hbm_to_vmem [thread:$0]  %s1, 512, %s27, [#allocation6], 128, 128, 8
    $region9: #{tpu_custom_call.1} parent=1 // pred_fallthru
      _
    // Predicated region
    $region10: #{tpu_custom_call.1} parent=1 // pred_check
      _
    $region11: #{tpu_custom_call.1} parent=1 // pred_check_branch
      %34 = sbr.rel (0) target = $region13
    $region12: #{tpu_custom_call.1} parent=1 // pred_region
      _
    $region13: #{tpu_custom_call.1} parent=1 // pred_fallthru
      _
    // Predicated region
    $region14: #{tpu_custom_call.1} parent=1 // pred_check
      _
    $region15: #{tpu_custom_call.1} parent=1 // pred_check_branch
      %36 = sbr.rel (0) target = $region17
    $region16: #{tpu_custom_call.1} parent=1 // pred_region
      %37 = dma.done [#allocation3], 128
    $region17: #{tpu_custom_call.1} parent=1 // pred_fallthru
      _
    // Predicated region
    $region18: #{tpu_custom_call.1} parent=1 // pred_check
      _
    $region19: #{tpu_custom_call.1} parent=1 // pred_check_branch
      %39 = sbr.rel (0) target = $region21
    $region20: #{tpu_custom_call.1} parent=1 // pred_region
      %40 = dma.done [#allocation6], 512
    $region21: #{tpu_custom_call.1} parent=1 // pred_fallthru
      _
    %v41 = vld [vmem:[#allocation2] sm:$0xff]
    %v42 = vld [vmem:[#allocation5] sm:$0xff]
    %v43 = vld [vmem:[#allocation5 + $0x8] sm:$0xff]
    %v44 = vld [vmem:[#allocation5 + $0x10] sm:$0xff]
    %v45 = vld [vmem:[#allocation5 + $0x18] sm:$0xff]
    %v46 = vld [vmem:[%s2] sm:$0x1]
    %v48 = vlaneseq
    %v49 = vshrl.u32 %v48, 7
    %v50 = vsub.s32 0, %v49
    %v51 = vrot.slane %v46, %v50
    %vm53 = vcmask 261120
    %v55 = vsel %vm53, %v41, 0
    %57 = vmatprep.subr.mxu0 0.0
    %58 = vmatpush1.msra.mxu0 0.0
    %59 = vmatprep.subr.mxu0 0.0
    %60 = vmatpush1.msra.mxu0 0.0
    %61 = vmatprep.subr.mxu0 0.0
    %62 = vmatpush1.msra.mxu0 0.0
    %63 = vmatprep.subr.mxu0 0.0
    %64 = vmatpush1.msra.mxu0 0.0
    %65 = vmatprep.subr.mxu0 0.0
    %66 = vmatpush1.msra.mxu0 0.0
    %67 = vmatprep.subr.mxu0 0.0
    %68 = vmatpush1.msra.mxu0 0.0
    %69 = vmatprep.subr.mxu0 0.0
    %70 = vmatpush1.msra.mxu0 0.0
    %71 = vmatprep.subr.mxu0 0.0
    %72 = vmatpush1.msra.mxu0 0.0
    %73 = vmatprep.subr.mxu0 0.0
    %74 = vmatpush1.msra.mxu0 0.0
    %75 = vmatprep.subr.mxu0 0.0
    %76 = vmatpush1.msra.mxu0 0.0
    %77 = vmatprep.subr.mxu0 0.0
    %78 = vmatpush1.msra.mxu0 0.0
    %79 = vmatprep.subr.mxu0 0.0
    %80 = vmatpush1.msra.mxu0 0.0
    %81 = vmatprep.subr.mxu0 0.0
    %82 = vmatpush1.msra.mxu0 %v45
    %83 = vmatprep.subr.mxu0 0.0
    %84 = vmatpush1.msra.mxu0 %v44
    %85 = vmatprep.subr.mxu0 0.0
    %86 = vmatpush1.msra.mxu0 %v43
    %87 = vmatprep.subr.mxu0 0.0
    %88 = vmatpush1.msra.mxu0 %v42
    %89 = vmatprep.subr.mxu0 0.0
    %90 = vmatpush2.msra.mxu0 0.0
    %91 = vmatprep.subr.mxu0 0.0
    %92 = vmatpush2.msra.mxu0 0.0
    %93 = vmatprep.subr.mxu0 0.0
    %94 = vmatpush2.msra.mxu0 0.0
    %95 = vmatprep.subr.mxu0 0.0
    %96 = vmatpush2.msra.mxu0 0.0
    %97 = vmatprep.subr.mxu0 0.0
    %98 = vmatpush2.msra.mxu0 0.0
    %99 = vmatprep.subr.mxu0 0.0
    %100 = vmatpush2.msra.mxu0 0.0
    %101 = vmatprep.subr.mxu0 0.0
    %102 = vmatpush2.msra.mxu0 0.0
    %103 = vmatprep.subr.mxu0 0.0
    %104 = vmatpush2.msra.mxu0 0.0
    %105 = vmatprep.subr.mxu0 0.0
    %106 = vmatpush2.msra.mxu0 0.0
    %107 = vmatprep.subr.mxu0 0.0
    %108 = vmatpush2.msra.mxu0 0.0
    %109 = vmatprep.subr.mxu0 0.0
    %110 = vmatpush2.msra.mxu0 0.0
    %111 = vmatprep.subr.mxu0 0.0
    %112 = vmatpush2.msra.mxu0 0.0
    %113 = vmatprep.subr.mxu0 0.0
    %114 = vmatpush2.msra.mxu0 0.0
    %115 = vmatprep.subr.mxu0 0.0
    %116 = vmatpush2.msra.mxu0 0.0
    %117 = vmatprep.subr.mxu0 0.0
    %118 = vmatpush2.msra.mxu0 0.0
    %119 = vmatprep.subr.mxu0 0.0
    %120 = vmatpush2.msra.mxu0 0.0
    %121 = vmatprep.mubr.f32.mxu0 0.0
    %122 = vmatmul.mubr.f32.gmra.mxu0 %v55
    %v123 = vpop.f32.mrf.mxu0
    %v124 = vadd.f32 %v51, %v123
    %v125 = vpop.f32.mrf.mxu0
    %126 = vdwg.mxu0
    %127 = vst [vmem:[#allocation7] sm:$0xff] %v124
    // Predicated region
    $region22: #{tpu_custom_call.1} parent=1 // pred_check
      _
    $region23: #{tpu_custom_call.1} parent=1 // pred_check_branch
      %129 = sbr.rel (0) target = $region25
    $region24: #{tpu_custom_call.1} parent=1 // pred_region
      %s131 = ssub.s32 128, 128
      %132 = vsyncadd [#allocation4], %s131
      %s134 = sshll.u32 [#allocation7], 4
      %s135 = int_to_ptr.vmem [resolvable:$true] %s134
      %137 = dma.vmem_to_hbm [thread:$0]  %s135, 128, %s3, [#allocation4]
    $region25: #{tpu_custom_call.1} parent=1 // pred_fallthru
      _
    // Predicated region
    $region26: #{tpu_custom_call.1} parent=1 // pred_check
      _
    $region27: #{tpu_custom_call.1} parent=1 // pred_check_branch
      %139 = sbr.rel (0) target = $region29
    $region28: #{tpu_custom_call.1} parent=1 // pred_region
      %140 = dma.done [#allocation4], 128
    $region29: #{tpu_custom_call.1} parent=1 // pred_fallthru
      _
    %141 = vsyncpa [#allocation3], 1
    %142 = vsyncpa [#allocation6], 1
    %143 = vsyncpa [#allocation4], 1

</llo_original>
